<compile_context>
chip_gen: v5e
topology: v5e:2x2
jax: 0.10.0
libtpu: 0.0.40
codegen_flags: <defaults>
</compile_context>

<pallas_src>
import math

import jax
import jax.numpy as jnp
from jax.experimental import pallas as pl
from jax.experimental.pallas import tpu as pltpu


def _round_up(x, m):
    return ((x + m - 1) // m) * m


def _linear_curve_kernel(coeffs_ref, x_ref, w_ref, b_ref, out_ref, l2p_ref, acc_ref):
    """coeffs_ref: SMEM (num_bends,) f32
       x_ref:      VMEM (tm, tk)           param_dtype
       w_ref:      VMEM (num_bends, tk, tn) param_dtype   (in, out) layout
       b_ref:      VMEM (num_bends, 1, tn)  param_dtype
       out_ref:    VMEM (tm, tn) f32
       l2p_ref:    VMEM (1, 1, 1) f32  -- one partial per grid step
       acc_ref:    VMEM (tm, tn) f32   -- K-axis accumulator (scratch)
    """
    i = pl.program_id(0)          # M tile
    k = pl.program_id(2)          # K tile (reduction, innermost)
    nk = pl.num_programs(2)
    nb = w_ref.shape[0]

    # Per-tile weighted combination of the bend parameters, in f32 on the VPU.
    # TODO(synk): the PyTorch `if coeff.item() == 0: continue` host-side skip is
    # data-dependent Python control flow; all bends are always combined here.
    w_t = coeffs_ref[0] * w_ref[0].astype(jnp.float32)
    b_t = coeffs_ref[0] * b_ref[0].astype(jnp.float32)
    for j in range(1, nb):
        c = coeffs_ref[j]
        w_t = w_t + c * w_ref[j].astype(jnp.float32)
        b_t = b_t + c * b_ref[j].astype(jnp.float32)

    @pl.when(k == 0)
    def _init():
        acc_ref[...] = jnp.zeros_like(acc_ref)

    # MXU: (tm, tk) @ (tk, tn), bf16 (or param dtype) inputs, f32 accumulation.
    acc_ref[...] += jnp.dot(
        x_ref[...], w_t.astype(x_ref.dtype), preferred_element_type=jnp.float32
    )

    @pl.when(k == nk - 1)
    def _finalize():
        # b_t is (1, tn); broadcasts over the (tm, tn) accumulator.
        out_ref[...] = (acc_ref[...] + b_t).astype(out_ref.dtype)

    # l2 partial for this grid step (XLU reduce on the tile we just built).
    # Each weight tile (j_tile, k_tile) is counted once (at i == 0); each bias
    # tile (j_tile) is counted once (at i == 0 and k == 0). Every grid point
    # writes its own output element, so this is race-free under 'parallel'
    # megacore sharding of the M/N axes.
    w_l2 = jnp.sum(w_t * w_t)
    b_l2 = jnp.sum(b_t * b_t)
    part = jnp.where(i == 0, w_l2 + jnp.where(k == 0, b_l2, 0.0), 0.0)
    l2p_ref[...] = jnp.full(l2p_ref.shape, part, dtype=l2p_ref.dtype)


def linear_curve_forward(x, weights_io, biases, coeffs, *,
                         param_dtype=jnp.bfloat16, tm=None, tn=None, tk=None):
    """x: (B, in) ; weights_io: (nb, in, out) pre-transposed ; biases: (nb, 1, out)
       coeffs: (nb,). Returns (out (B, out) f32, l2 scalar f32)."""
    B, K = x.shape
    nb, K_w, N = weights_io.shape
    assert K_w == K and biases.shape == (nb, 1, N) and coeffs.shape == (nb,)

    # Tile sizes: 256-aligned N/K where possible (v6e/v7x MXU is 2x256x256),
    # clamped to the (padded) problem size for small shapes.
    if tm is None:
        tm = 256 if B >= 256 else _round_up(B, 8)
    if tn is None:
        tn = 256 if N >= 256 else _round_up(N, 128)
    if tk is None:
        tk = 512 if K >= 512 else _round_up(K, 128)

    M_pad = _round_up(B, tm)
    N_pad = _round_up(N, tn)
    K_pad = _round_up(K, tk)

    # Zero-padding keeps the matmul and the l2 exactly equal to the un-padded math.
    x_p = jnp.zeros((M_pad, K_pad), param_dtype).at[:B, :K].set(x.astype(param_dtype))
    w_p = jnp.zeros((nb, K_pad, N_pad), param_dtype).at[:, :K, :N].set(
        weights_io.astype(param_dtype))
    b_p = jnp.zeros((nb, 1, N_pad), param_dtype).at[:, :, :N].set(
        biases.astype(param_dtype))
    coeffs = coeffs.astype(jnp.float32)

    gm, gn, gk = M_pad // tm, N_pad // tn, K_pad // tk

    itemsize = jnp.dtype(param_dtype).itemsize
    cost = pl.CostEstimate(
        flops=2 * M_pad * N_pad * K_pad + 2 * nb * K_pad * N_pad * gm,
        transcendentals=0,
        bytes_accessed=int(w_p.size * itemsize * gm + x_p.size * itemsize * gn
                           + b_p.size * itemsize * gm + M_pad * N_pad * 4),
    )

    out_p, l2_parts = pl.pallas_call(
        _linear_curve_kernel,
        out_shape=(
            jax.ShapeDtypeStruct((M_pad, N_pad), jnp.float32),
            jax.ShapeDtypeStruct((gm * gn * gk, 1, 1), jnp.float32),
        ),
        grid=(gm, gn, gk),
        in_specs=[
            pl.BlockSpec(memory_space=pltpu.MemorySpace.SMEM),          # coeffs
            pl.BlockSpec((tm, tk), lambda i, j, k: (i, k)),             # x
            pl.BlockSpec((nb, tk, tn), lambda i, j, k: (0, k, j)),      # weights
            pl.BlockSpec((nb, 1, tn), lambda i, j, k: (0, 0, j)),       # biases
        ],
        out_specs=(
            pl.BlockSpec((tm, tn), lambda i, j, k: (i, j)),             # output
            pl.BlockSpec((1, 1, 1),                                     # l2 partials
                         lambda i, j, k: ((i * gn + j) * gk + k, 0, 0)),
        ),
        scratch_shapes=[pltpu.VMEM((tm, tn), jnp.float32)],
        compiler_params=pltpu.CompilerParams(
            dimension_semantics=("parallel", "parallel", "arbitrary"),
            vmem_limit_bytes=32 * 1024 * 1024,
        ),
        cost_estimate=cost,
    )(coeffs, x_p, w_p, b_p)

    out = out_p[:B, :N]
    l2 = jnp.sum(l2_parts)
    return out, l2


def init_params(key, num_bends, in_features, out_features):
    """Mirrors the PyTorch init: (rand(shape) - 0.5) * 2 / sqrt(in_features).

    Weights are stored pre-transposed as (num_bends, in_features, out_features)
    (the kernel's MXU-friendly layout); biases are (num_bends, 1, out_features)."""
    kw, kb = jax.random.split(key)
    scale = 2.0 / math.sqrt(in_features)
    weights_io = (jax.random.uniform(
        kw, (num_bends, in_features, out_features), jnp.float32) - 0.5) * scale
    biases = (jax.random.uniform(
        kb, (num_bends, 1, out_features), jnp.float32) - 0.5) * scale
    return weights_io, biases


if __name__ == "__main__":
    batch, in_features, out_features, num_bends = 24, 192, 160, 3

    key = jax.random.PRNGKey(0)
    kx, kp = jax.random.split(key)
    x = jax.random.normal(kx, (batch, in_features), jnp.float32)
    weights_io, biases = init_params(kp, num_bends, in_features, out_features)

    # Bezier-style curve coefficients at t = 0.3 (what the curve net would pass).
    t = 0.3
    coeffs = jnp.array([(1 - t) ** 2, 2 * t * (1 - t), t ** 2], jnp.float32)

    # Default tiles (single grid step at these small shapes).
    out1, l2_1 = linear_curve_forward(x, weights_io, biases, coeffs)
    # Small explicit tiles -> multi-step (3,2,2) grid: exercises the K-axis
    # accumulator and the once-per-tile l2 guards.
    out2, l2_2 = linear_curve_forward(x, weights_io, biases, coeffs,
                                      tm=8, tn=128, tk=128)
    out1, l2_1, out2, l2_2 = jax.block_until_ready((out1, l2_1, out2, l2_2))

    # Pure-JAX reference mirroring the kernel's bf16-storage / f32-accumulate path.
    xb = x.astype(jnp.bfloat16).astype(jnp.float32)
    wb = weights_io.astype(jnp.bfloat16).astype(jnp.float32)
    bb = biases.astype(jnp.bfloat16).astype(jnp.float32)
    w_t_ref = jnp.einsum("j,jio->io", coeffs, wb)
    b_t_ref = jnp.einsum("j,jko->ko", coeffs, bb)[0]
    ref_out = xb @ w_t_ref.astype(jnp.bfloat16).astype(jnp.float32) + b_t_ref[None, :]
    ref_l2 = jnp.sum(w_t_ref ** 2) + jnp.sum(b_t_ref ** 2)

    for out, l2 in ((out1, l2_1), (out2, l2_2)):
        assert out.shape == (batch, out_features)
        assert jnp.allclose(out, ref_out, atol=1e-2, rtol=1e-2), "output mismatch"
        assert jnp.allclose(l2, ref_l2, atol=1e-2, rtol=1e-2), "l2 mismatch"

    print("KERNEL_OK")
</pallas_src>

<mosaic_0001>
module attributes {stable_mosaic.version = 11 : i64} {
  func.func @_linear_curve_kernel(%arg0: i32, %arg1: i32, %arg2: i32, %arg3: memref<3xf32, #tpu.memory_space<smem>>, %arg4: memref<24x256xbf16, #tpu.memory_space<vmem>>, %arg5: memref<3x256x256xbf16, #tpu.memory_space<vmem>>, %arg6: memref<3x1x256xbf16, #tpu.memory_space<vmem>>, %arg7: memref<24x256xf32, #tpu.memory_space<vmem>>, %arg8: memref<1x1x1xf32, #tpu.memory_space<vmem>>, %arg9: memref<24x256xf32, #tpu.memory_space<vmem>>) attributes {dimension_semantics = [#tpu.dimension_semantics<parallel>, #tpu.dimension_semantics<parallel>, #tpu.dimension_semantics<arbitrary>], iteration_bounds = array<i64: 1, 1, 1>, scalar_prefetch = 0 : i64, scratch_operands = 1 : i64, tpu.core_type = #tpu.core_type<tc>, window_params = [{transform_indices = @transform_0, window_bounds = array<i64: 3>}, {transform_indices = @transform_1, window_bounds = array<i64: 24, 256>}, {transform_indices = @transform_2, window_bounds = array<i64: 3, 256, 256>}, {transform_indices = @transform_3, window_bounds = array<i64: 3, 1, 256>}, {transform_indices = @transform_4, window_bounds = array<i64: 24, 256>}, {transform_indices = @transform_5, window_bounds = array<i64: 1, 1, 1>}]} {
    %c0 = arith.constant 0 : index
    %0 = memref.load %arg3[%c0] : memref<3xf32, #tpu.memory_space<smem>>
    %c0_0 = arith.constant 0 : index
    %c0_1 = arith.constant 0 : index
    %c0_2 = arith.constant 0 : index
    %1 = vector.load %arg5[%c0_0, %c0_1, %c0_2] : memref<3x256x256xbf16, #tpu.memory_space<vmem>>, vector<1x256x256xbf16>
    %2 = vector.shape_cast %1 : vector<1x256x256xbf16> to vector<256x256xbf16>
    %3 = arith.extf %2 : vector<256x256xbf16> to vector<256x256xf32>
    %4 = vector.broadcast %0 : f32 to vector<256x256xf32>
    %5 = arith.mulf %4, %3 : vector<256x256xf32>
    %c0_3 = arith.constant 0 : index
    %6 = memref.load %arg3[%c0_3] : memref<3xf32, #tpu.memory_space<smem>>
    %c0_4 = arith.constant 0 : index
    %c0_5 = arith.constant 0 : index
    %c0_6 = arith.constant 0 : index
    %7 = vector.load %arg6[%c0_4, %c0_5, %c0_6] : memref<3x1x256xbf16, #tpu.memory_space<vmem>>, vector<1x1x256xbf16>
    %8 = vector.shape_cast %7 : vector<1x1x256xbf16> to vector<1x256xbf16>
    %9 = arith.extf %8 : vector<1x256xbf16> to vector<1x256xf32>
    %10 = vector.broadcast %6 : f32 to vector<1x256xf32>
    %11 = arith.mulf %10, %9 : vector<1x256xf32>
    %c1 = arith.constant 1 : index
    %12 = memref.load %arg3[%c1] : memref<3xf32, #tpu.memory_space<smem>>
    %c1_7 = arith.constant 1 : index
    %c0_8 = arith.constant 0 : index
    %c0_9 = arith.constant 0 : index
    %13 = vector.load %arg5[%c1_7, %c0_8, %c0_9] : memref<3x256x256xbf16, #tpu.memory_space<vmem>>, vector<1x256x256xbf16>
    %14 = vector.shape_cast %13 : vector<1x256x256xbf16> to vector<256x256xbf16>
    %15 = arith.extf %14 : vector<256x256xbf16> to vector<256x256xf32>
    %16 = vector.broadcast %12 : f32 to vector<256x256xf32>
    %17 = arith.mulf %16, %15 : vector<256x256xf32>
    %18 = arith.addf %5, %17 : vector<256x256xf32>
    %c1_10 = arith.constant 1 : index
    %c0_11 = arith.constant 0 : index
    %c0_12 = arith.constant 0 : index
    %19 = vector.load %arg6[%c1_10, %c0_11, %c0_12] : memref<3x1x256xbf16, #tpu.memory_space<vmem>>, vector<1x1x256xbf16>
    %20 = vector.shape_cast %19 : vector<1x1x256xbf16> to vector<1x256xbf16>
    %21 = arith.extf %20 : vector<1x256xbf16> to vector<1x256xf32>
    %22 = vector.broadcast %12 : f32 to vector<1x256xf32>
    %23 = arith.mulf %22, %21 : vector<1x256xf32>
    %24 = arith.addf %11, %23 : vector<1x256xf32>
    %c2 = arith.constant 2 : index
    %25 = memref.load %arg3[%c2] : memref<3xf32, #tpu.memory_space<smem>>
    %c2_13 = arith.constant 2 : index
    %c0_14 = arith.constant 0 : index
    %c0_15 = arith.constant 0 : index
    %26 = vector.load %arg5[%c2_13, %c0_14, %c0_15] : memref<3x256x256xbf16, #tpu.memory_space<vmem>>, vector<1x256x256xbf16>
    %27 = vector.shape_cast %26 : vector<1x256x256xbf16> to vector<256x256xbf16>
    %28 = arith.extf %27 : vector<256x256xbf16> to vector<256x256xf32>
    %29 = vector.broadcast %25 : f32 to vector<256x256xf32>
    %30 = arith.mulf %29, %28 : vector<256x256xf32>
    %31 = arith.addf %18, %30 : vector<256x256xf32>
    %c2_16 = arith.constant 2 : index
    %c0_17 = arith.constant 0 : index
    %c0_18 = arith.constant 0 : index
    %32 = vector.load %arg6[%c2_16, %c0_17, %c0_18] : memref<3x1x256xbf16, #tpu.memory_space<vmem>>, vector<1x1x256xbf16>
    %33 = vector.shape_cast %32 : vector<1x1x256xbf16> to vector<1x256xbf16>
    %34 = arith.extf %33 : vector<1x256xbf16> to vector<1x256xf32>
    %35 = vector.broadcast %25 : f32 to vector<1x256xf32>
    %36 = arith.mulf %35, %34 : vector<1x256xf32>
    %37 = arith.addf %24, %36 : vector<1x256xf32>
    %c0_i32 = arith.constant 0 : i32
    %38 = arith.cmpi eq, %arg2, %c0_i32 : i32
    %39 = arith.extui %38 : i1 to i32
    %c0_i32_19 = arith.constant 0 : i32
    %40 = arith.cmpi ne, %39, %c0_i32_19 : i32
    scf.if %40 {
      %cst_37 = arith.constant 0.000000e+00 : f32
      %67 = vector.broadcast %cst_37 : f32 to vector<24x256xf32>
      %c0_38 = arith.constant 0 : index
      %c0_39 = arith.constant 0 : index
      %68 = vector.load %arg9[%c0_38, %c0_39] : memref<24x256xf32, #tpu.memory_space<vmem>>, vector<24x256xf32>
      tpu.vector_store %arg9[%c0_38, %c0_39], %67 {strides = array<i32>} : memref<24x256xf32, #tpu.memory_space<vmem>>, vector<24x256xf32>,
    } else {
    }
    %c0_20 = arith.constant 0 : index
    %c0_21 = arith.constant 0 : index
    %41 = vector.load %arg9[%c0_20, %c0_21] : memref<24x256xf32, #tpu.memory_space<vmem>>, vector<24x256xf32>
    %c0_22 = arith.constant 0 : index
    %c0_23 = arith.constant 0 : index
    %42 = vector.load %arg4[%c0_22, %c0_23] : memref<24x256xbf16, #tpu.memory_space<vmem>>, vector<24x256xbf16>
    %43 = arith.truncf %31 : vector<256x256xf32> to vector<256x256xbf16>
    %cst = arith.constant dense<0.000000e+00> : vector<24x256xf32>
    %44 = tpu.matmul %42, %43, %cst {dimension_numbers = #tpu.dot_dimension_numbers<[1], [0], [0], [1], [0, 0, 1, 1], [], []>} : vector<24x256xbf16>, vector<256x256xbf16>, vector<24x256xf32> -> vector<24x256xf32>
    %45 = arith.addf %41, %44 : vector<24x256xf32>
    %c0_24 = arith.constant 0 : index
    %c0_25 = arith.constant 0 : index
    %46 = vector.load %arg9[%c0_24, %c0_25] : memref<24x256xf32, #tpu.memory_space<vmem>>, vector<24x256xf32>
    tpu.vector_store %arg9[%c0_24, %c0_25], %45 {strides = array<i32>} : memref<24x256xf32, #tpu.memory_space<vmem>>, vector<24x256xf32>,
    %c0_i32_26 = arith.constant 0 : i32
    %47 = arith.cmpi eq, %arg2, %c0_i32_26 : i32
    %48 = arith.extui %47 : i1 to i32
    %c0_i32_27 = arith.constant 0 : i32
    %49 = arith.cmpi ne, %48, %c0_i32_27 : i32
    scf.if %49 {
      %c0_37 = arith.constant 0 : index
      %c0_38 = arith.constant 0 : index
      %67 = vector.load %arg9[%c0_37, %c0_38] : memref<24x256xf32, #tpu.memory_space<vmem>>, vector<24x256xf32>
      %68 = vector.broadcast %37 : vector<1x256xf32> to vector<24x256xf32>
      %69 = arith.addf %67, %68 : vector<24x256xf32>
      %c0_39 = arith.constant 0 : index
      %c0_40 = arith.constant 0 : index
      %70 = vector.load %arg7[%c0_39, %c0_40] : memref<24x256xf32, #tpu.memory_space<vmem>>, vector<24x256xf32>
      tpu.vector_store %arg7[%c0_39, %c0_40], %69 {strides = array<i32>} : memref<24x256xf32, #tpu.memory_space<vmem>>, vector<24x256xf32>,
    } else {
    }
    %50 = arith.mulf %31, %31 : vector<256x256xf32>
    %51 = vector.shape_cast %50 : vector<256x256xf32> to vector<1x256x256xf32>
    %cst_28 = arith.constant dense<0.000000e+00> : vector<1xf32>
    %52 = vector.multi_reduction <add>, %51, %cst_28 [1, 2] : vector<1x256x256xf32> to vector<1xf32>
    %53 = vector.shape_cast %52 : vector<1xf32> to vector<1x1x1xf32>
    %54 = vector.extract %53[0, 0, 0] : f32 from vector<1x1x1xf32>
    %55 = arith.mulf %37, %37 : vector<1x256xf32>
    %56 = vector.shape_cast %55 : vector<1x256xf32> to vector<1x1x256xf32>
    %cst_29 = arith.constant dense<0.000000e+00> : vector<1xf32>
    %57 = vector.multi_reduction <add>, %56, %cst_29 [1, 2] : vector<1x1x256xf32> to vector<1xf32>
    %58 = vector.shape_cast %57 : vector<1xf32> to vector<1x1x1xf32>
    %59 = vector.extract %58[0, 0, 0] : f32 from vector<1x1x1xf32>
    %c0_i32_30 = arith.constant 0 : i32
    %60 = arith.cmpi eq, %arg0, %c0_i32_30 : i32
    %c0_i32_31 = arith.constant 0 : i32
    %61 = arith.cmpi eq, %arg2, %c0_i32_31 : i32
    %cst_32 = arith.constant 0.000000e+00 : f32
    %62 = arith.select %61, %59, %cst_32 : f32
    %63 = arith.addf %54, %62 : f32
    %cst_33 = arith.constant 0.000000e+00 : f32
    %64 = arith.select %60, %63, %cst_33 : f32
    %65 = vector.broadcast %64 : f32 to vector<1x1x1xf32>
    %c0_34 = arith.constant 0 : index
    %c0_35 = arith.constant 0 : index
    %c0_36 = arith.constant 0 : index
    %66 = vector.load %arg8[%c0_34, %c0_35, %c0_36] : memref<1x1x1xf32, #tpu.memory_space<vmem>>, vector<1x1x1xf32>
    tpu.vector_store %arg8[%c0_34, %c0_35, %c0_36], %65 {strides = array<i32>} : memref<1x1x1xf32, #tpu.memory_space<vmem>>, vector<1x1x1xf32>,
    return
  }
  func.func @transform_0(%arg0: i32, %arg1: i32, %arg2: i32) -> i32 {
    %c0_i32 = arith.constant 0 : i32
    %c0_i32_0 = arith.constant 0 : i32
    return %c0_i32 : i32
  }
  func.func @transform_1(%arg0: i32, %arg1: i32, %arg2: i32) -> (i32, i32) {
    %c0_i32 = arith.constant 0 : i32
    return %arg0, %arg2 : i32, i32
  }
  func.func @transform_2(%arg0: i32, %arg1: i32, %arg2: i32) -> (i32, i32, i32) {
    %c0_i32 = arith.constant 0 : i32
    %c0_i32_0 = arith.constant 0 : i32
    return %c0_i32, %arg2, %arg1 : i32, i32, i32
  }
  func.func @transform_3(%arg0: i32, %arg1: i32, %arg2: i32) -> (i32, i32, i32) {
    %c0_i32 = arith.constant 0 : i32
    %c0_i32_0 = arith.constant 0 : i32
    %c0_i32_1 = arith.constant 0 : i32
    return %c0_i32, %c0_i32_0, %arg1 : i32, i32, i32
  }
  func.func @transform_4(%arg0: i32, %arg1: i32, %arg2: i32) -> (i32, i32) {
    %c0_i32 = arith.constant 0 : i32
    return %arg0, %arg1 : i32, i32
  }
  func.func @transform_5(%arg0: i32, %arg1: i32, %arg2: i32) -> (i32, i32, i32) {
    %c1_i32 = arith.constant 1 : i32
    %0 = arith.muli %arg0, %c1_i32 : i32
    %1 = arith.addi %0, %arg1 : i32
    %c1_i32_0 = arith.constant 1 : i32
    %2 = arith.muli %1, %c1_i32_0 : i32
    %3 = arith.addi %2, %arg2 : i32
    %c0_i32 = arith.constant 0 : i32
    %c0_i32_1 = arith.constant 0 : i32
    %c0_i32_2 = arith.constant 0 : i32
    return %3, %c0_i32, %c0_i32_1 : i32, i32, i32
  }
}

</mosaic_0001>

<llo_original>
// kernel: tpu_custom_call.1
$region0: #{tpu_custom_call.1}
  #allocation0 [shape = 'u32[]', space=smem, size = 0x4, offset = 0x4, fixed_abs, tag = 'smem constant byte address 0x4 - core index']
  #allocation1 [shape = 'u32[72,128]{1,0:T(1,128)}', space=vmem, size = 0x9000, scoped, tag = 'internal scratch']
  #allocation2 [shape = 'f32[24,256]{1,0:T(8,128)}', space=vmem, size = 0x6000, scoped, tag = 'scratch operand']
  %s0 = inlined_call_operand.vmem [shape: f32[3], index: 0, kind: input, shape index: {}]
  %s1 = inlined_call_operand.hbm [shape: bf16[24,256], index: 1, kind: input, shape index: {}]
  %s2 = inlined_call_operand.hbm [shape: bf16[3,256,256], index: 2, kind: input, shape index: {}]
  %s3 = inlined_call_operand.vmem [shape: bf16[3,1,256], index: 3, kind: input, shape index: {}]
  %s4 = inlined_call_operand.hbm [shape: f32[24,256], index: 4, kind: output, shape index: {0}]
  %s5 = inlined_call_operand.hbm [shape: f32[1,1,1], index: 5, kind: output, shape index: {1}]
  %6 = xla_tuple %s4, %s5
  %s7 = sld [smem:[#allocation0]]
  $region54: #{tpu_custom_call.1} parent=0
    _
  %s9 = ssub.s32 1, %s7
  %s10 = scalar_select 0, %s9, %s7
  $region1: #{tpu_custom_call.1} parent=0
    #allocation3 [shape = 'u8[512]{0}', space=smem, size = 0x200, scoped, tag = 'input window, operand 0, single buffered']
    #allocation4 [shape = 's32[1]{0}', space=sflag, size = 0x4, scoped, tag = 'scoped memory for tpu_custom_call.1']
    #allocation5 [shape = 's32[1]{0}', space=sflag, size = 0x4, scoped, tag = 'scoped memory for tpu_custom_call.1']
    #allocation6 [shape = 's32[1]{0}', space=sflag, size = 0x4, scoped, tag = 'scoped memory for tpu_custom_call.1']
    #allocation7 [shape = 'u8[12288]{0}', space=vmem, size = 0x3000, scoped, tag = 'input window, operand 1, single buffered']
    #allocation8 [shape = 'u8[393216]{0}', space=vmem, size = 0x60000, scoped, tag = 'input window, operand 2, single buffered']
    #allocation9 [shape = 's32[1]{0}', space=sflag, size = 0x4, scoped, tag = 'scoped memory for tpu_custom_call.1']
    #allocation10 [shape = 'u8[24576]{0}', space=vmem, size = 0x6000, scoped, tag = 'output window, operand 0, single buffered']
    #allocation11 [shape = 'u8[512]{0}', space=vmem, size = 0x400, scoped, tag = 'output window, operand 1, single buffered']
    #allocation12 [shape = 's32[1]{0}', space=sflag, size = 0x4, scoped, tag = 'scoped memory for tpu_custom_call.1']
    %11 = vsyncpa [#allocation6], 0
    %12 = vsyncpa [#allocation4], 0
    %13 = vsyncpa [#allocation9], 0
    %14 = vsyncpa [#allocation5], 0
    %15 = vsyncpa [#allocation12], 0
    // Predicated region
    $region2: #{tpu_custom_call.1} parent=1 // pred_check
      _
    $region3: #{tpu_custom_call.1} parent=1 // pred_check_branch
      %17 = sbr.rel (0) target = $region5
    $region4: #{tpu_custom_call.1} parent=1 // pred_region
      %19 = vsyncadd [#allocation6], 0
      %s21 = sshll.u32 %s0, 4
      %s22 = int_to_ptr.vmem [resolvable:$true] %s21
      %24 = dma.vmem_to_smem %s22, 16, [#allocation3], [#allocation6]
    $region5: #{tpu_custom_call.1} parent=1 // pred_fallthru
      _
    // Predicated region
    $region6: #{tpu_custom_call.1} parent=1 // pred_check
      _
    $region7: #{tpu_custom_call.1} parent=1 // pred_check_branch
      %26 = sbr.rel (0) target = $region9
    $region8: #{tpu_custom_call.1} parent=1 // pred_region
      %28 = vsyncadd [#allocation4], 0
      %s29 = sshll.u32 %s1, 4
      %s30 = int_to_ptr.hbm [resolvable:$true] %s29
      %s31 = sshll.u32 [#allocation7], 4
      %s32 = int_to_ptr.vmem [resolvable:$true] %s31
      %37 = dma.hbm_to_vmem [thread:$0]  %s30, 384, %s32, [#allocation4], 128, 128, 8
    $region9: #{tpu_custom_call.1} parent=1 // pred_fallthru
      _
    // Predicated region
    $region10: #{tpu_custom_call.1} parent=1 // pred_check
      _
    $region11: #{tpu_custom_call.1} parent=1 // pred_check_branch
      %39 = sbr.rel (0) target = $region13
    $region12: #{tpu_custom_call.1} parent=1 // pred_region
      %41 = vsyncadd [#allocation9], 0
      %s42 = sshll.u32 %s2, 4
      %s43 = int_to_ptr.hbm [resolvable:$true] %s42
      %s44 = sshll.u32 [#allocation8], 4
      %s45 = int_to_ptr.vmem [resolvable:$true] %s44
      %50 = dma.hbm_to_vmem [thread:$0]  %s43, 12288, %s45, [#allocation9], 128, 128, 8
    $region13: #{tpu_custom_call.1} parent=1 // pred_fallthru
      _
    // Predicated region
    $region14: #{tpu_custom_call.1} parent=1 // pred_check
      _
    $region15: #{tpu_custom_call.1} parent=1 // pred_check_branch
      %52 = sbr.rel (0) target = $region17
    $region16: #{tpu_custom_call.1} parent=1 // pred_region
      _
    $region17: #{tpu_custom_call.1} parent=1 // pred_fallthru
      _
    // Predicated region
    $region18: #{tpu_custom_call.1} parent=1 // pred_check
      _
    $region19: #{tpu_custom_call.1} parent=1 // pred_check_branch
      %54 = sbr.rel (0) target = $region21
    $region20: #{tpu_custom_call.1} parent=1 // pred_region
      %56 = dma.done [#allocation6], 16
    $region21: #{tpu_custom_call.1} parent=1 // pred_fallthru
      _
    // Predicated region
    $region22: #{tpu_custom_call.1} parent=1 // pred_check
      _
    $region23: #{tpu_custom_call.1} parent=1 // pred_check_branch
      %58 = sbr.rel (0) target = $region25
    $region24: #{tpu_custom_call.1} parent=1 // pred_region
      %60 = dma.done [#allocation4], 384
    $region25: #{tpu_custom_call.1} parent=1 // pred_fallthru
      _
    // Predicated region
    $region26: #{tpu_custom_call.1} parent=1 // pred_check
      _
    $region27: #{tpu_custom_call.1} parent=1 // pred_check_branch
      %62 = sbr.rel (0) target = $region29
    $region28: #{tpu_custom_call.1} parent=1 // pred_region
      %64 = dma.done [#allocation9], 12288
    $region29: #{tpu_custom_call.1} parent=1 // pred_fallthru
      _
    %65 = sfence
    %s66 = sadd.s32 0, 0
    %s67 = sadd.s32 %s66, 0
    %s68 = sld [smem:[#allocation3]]
    %v69 = vld [vmem:[#allocation8] sm:$0xff]
    %v70 = vld [vmem:[#allocation8 + $0x8] sm:$0xff]
    %v71 = vld [vmem:[#allocation8 + $0x10] sm:$0xff]
    %v72 = vld [vmem:[#allocation8 + $0x18] sm:$0xff]
    %v73 = vld [vmem:[#allocation8 + $0x20] sm:$0xff]
    %v74 = vld [vmem:[#allocation8 + $0x28] sm:$0xff]
    %v75 = vld [vmem:[#allocation8 + $0x30] sm:$0xff]
    %v76 = vld [vmem:[#allocation8 + $0x38] sm:$0xff]
    %v77 = vld [vmem:[#allocation8 + $0x40] sm:$0xff]
    %v78 = vld [vmem:[#allocation8 + $0x48] sm:$0xff]
    %v79 = vld [vmem:[#allocation8 + $0x50] sm:$0xff]
    %v80 = vld [vmem:[#allocation8 + $0x58] sm:$0xff]
    %v81 = vld [vmem:[#allocation8 + $0x60] sm:$0xff]
    %v82 = vld [vmem:[#allocation8 + $0x68] sm:$0xff]
    %v83 = vld [vmem:[#allocation8 + $0x70] sm:$0xff]
    %v84 = vld [vmem:[#allocation8 + $0x78] sm:$0xff]
    %v85 = vld [vmem:[#allocation8 + $0x80] sm:$0xff]
    %v86 = vld [vmem:[#allocation8 + $0x88] sm:$0xff]
    %v87 = vld [vmem:[#allocation8 + $0x90] sm:$0xff]
    %v88 = vld [vmem:[#allocation8 + $0x98] sm:$0xff]
    %v89 = vld [vmem:[#allocation8 + $0xa0] sm:$0xff]
    %v90 = vld [vmem:[#allocation8 + $0xa8] sm:$0xff]
    %v91 = vld [vmem:[#allocation8 + $0xb0] sm:$0xff]
    %v92 = vld [vmem:[#allocation8 + $0xb8] sm:$0xff]
    %v93 = vld [vmem:[#allocation8 + $0xc0] sm:$0xff]
    %v94 = vld [vmem:[#allocation8 + $0xc8] sm:$0xff]
    %v95 = vld [vmem:[#allocation8 + $0xd0] sm:$0xff]
    %v96 = vld [vmem:[#allocation8 + $0xd8] sm:$0xff]
    %v97 = vld [vmem:[#allocation8 + $0xe0] sm:$0xff]
    %v98 = vld [vmem:[#allocation8 + $0xe8] sm:$0xff]
    %v99 = vld [vmem:[#allocation8 + $0xf0] sm:$0xff]
    %v100 = vld [vmem:[#allocation8 + $0xf8] sm:$0xff]
    %v101 = vunpack.c.l.bf16 %v69
    %v102 = vunpack.c.h.bf16 %v69
    %v103 = vunpack.c.l.bf16 %v70
    %v104 = vunpack.c.h.bf16 %v70
    %v105 = vunpack.c.l.bf16 %v71
    %v106 = vunpack.c.h.bf16 %v71
    %v107 = vunpack.c.l.bf16 %v72
    %v108 = vunpack.c.h.bf16 %v72
    %v109 = vunpack.c.l.bf16 %v73
    %v110 = vunpack.c.h.bf16 %v73
    %v111 = vunpack.c.l.bf16 %v74
    %v112 = vunpack.c.h.bf16 %v74
    %v113 = vunpack.c.l.bf16 %v75
    %v114 = vunpack.c.h.bf16 %v75
    %v115 = vunpack.c.l.bf16 %v76
    %v116 = vunpack.c.h.bf16 %v76
    %v117 = vunpack.c.l.bf16 %v77
    %v118 = vunpack.c.h.bf16 %v77
    %v119 = vunpack.c.l.bf16 %v78
    %v120 = vunpack.c.h.bf16 %v78
    %v121 = vunpack.c.l.bf16 %v79
    %v122 = vunpack.c.h.bf16 %v79
    %v123 = vunpack.c.l.bf16 %v80
    %v124 = vunpack.c.h.bf16 %v80
    %v125 = vunpack.c.l.bf16 %v81
    %v126 = vunpack.c.h.bf16 %v81
    %v127 = vunpack.c.l.bf16 %v82
    %v128 = vunpack.c.h.bf16 %v82
    %v129 = vunpack.c.l.bf16 %v83
    %v130 = vunpack.c.h.bf16 %v83
    %v131 = vunpack.c.l.bf16 %v84
    %v132 = vunpack.c.h.bf16 %v84
    %v133 = vunpack.c.l.bf16 %v85
    %v134 = vunpack.c.h.bf16 %v85
    %v135 = vunpack.c.l.bf16 %v86
    %v136 = vunpack.c.h.bf16 %v86
    %v137 = vunpack.c.l.bf16 %v87
    %v138 = vunpack.c.h.bf16 %v87
    %v139 = vunpack.c.l.bf16 %v88
    %v140 = vunpack.c.h.bf16 %v88
    %v141 = vunpack.c.l.bf16 %v89
    %v142 = vunpack.c.h.bf16 %v89
    %v143 = vunpack.c.l.bf16 %v90
    %v144 = vunpack.c.h.bf16 %v90
    %v145 = vunpack.c.l.bf16 %v91
    %v146 = vunpack.c.h.bf16 %v91
    %v147 = vunpack.c.l.bf16 %v92
    %v148 = vunpack.c.h.bf16 %v92
    %v149 = vunpack.c.l.bf16 %v93
    %v150 = vunpack.c.h.bf16 %v93
    %v151 = vunpack.c.l.bf16 %v94
    %v152 = vunpack.c.h.bf16 %v94
    %v153 = vunpack.c.l.bf16 %v95
    %v154 = vunpack.c.h.bf16 %v95
    %v155 = vunpack.c.l.bf16 %v96
    %v156 = vunpack.c.h.bf16 %v96
    %v157 = vunpack.c.l.bf16 %v97
    %v158 = vunpack.c.h.bf16 %v97
    %v159 = vunpack.c.l.bf16 %v98
    %v160 = vunpack.c.h.bf16 %v98
    %v161 = vunpack.c.l.bf16 %v99
    %v162 = vunpack.c.h.bf16 %v99
    %v163 = vunpack.c.l.bf16 %v100
    %v164 = vunpack.c.h.bf16 %v100
    %v165 = vstv %s68
    %v166 = vmul.f32 %v165, %v101
    %v167 = vmul.f32 %v165, %v102
    %v168 = vmul.f32 %v165, %v103
    %v169 = vmul.f32 %v165, %v104
    %v170 = vmul.f32 %v165, %v105
    %v171 = vmul.f32 %v165, %v106
    %v172 = vmul.f32 %v165, %v107
    %v173 = vmul.f32 %v165, %v108
    %v174 = vmul.f32 %v165, %v109
    %v175 = vmul.f32 %v165, %v110
    %v176 = vmul.f32 %v165, %v111
    %v177 = vmul.f32 %v165, %v112
    %v178 = vmul.f32 %v165, %v113
    %v179 = vmul.f32 %v165, %v114
    %v180 = vmul.f32 %v165, %v115
    %v181 = vmul.f32 %v165, %v116
    %v182 = vmul.f32 %v165, %v117
    %v183 = vmul.f32 %v165, %v118
    %v184 = vmul.f32 %v165, %v119
    %v185 = vmul.f32 %v165, %v120
    %v186 = vmul.f32 %v165, %v121
    %v187 = vmul.f32 %v165, %v122
    %v188 = vmul.f32 %v165, %v123
    %v189 = vmul.f32 %v165, %v124
    %v190 = vmul.f32 %v165, %v125
    %v191 = vmul.f32 %v165, %v126
    %v192 = vmul.f32 %v165, %v127
    %v193 = vmul.f32 %v165, %v128
    %v194 = vmul.f32 %v165, %v129
    %v195 = vmul.f32 %v165, %v130
    %v196 = vmul.f32 %v165, %v131
    %v197 = vmul.f32 %v165, %v132
    %v198 = vmul.f32 %v165, %v133
    %v199 = vmul.f32 %v165, %v134
    %v200 = vmul.f32 %v165, %v135
    %v201 = vmul.f32 %v165, %v136
    %v202 = vmul.f32 %v165, %v137
    %v203 = vmul.f32 %v165, %v138
    %v204 = vmul.f32 %v165, %v139
    %v205 = vmul.f32 %v165, %v140
    %v206 = vmul.f32 %v165, %v141
    %v207 = vmul.f32 %v165, %v142
    %v208 = vmul.f32 %v165, %v143
    %v209 = vmul.f32 %v165, %v144
    %v210 = vmul.f32 %v165, %v145
    %v211 = vmul.f32 %v165, %v146
    %v212 = vmul.f32 %v165, %v147
    %v213 = vmul.f32 %v165, %v148
    %v214 = vmul.f32 %v165, %v149
    %v215 = vmul.f32 %v165, %v150
    %v216 = vmul.f32 %v165, %v151
    %v217 = vmul.f32 %v165, %v152
    %v218 = vmul.f32 %v165, %v153
    %v219 = vmul.f32 %v165, %v154
    %v220 = vmul.f32 %v165, %v155
    %v221 = vmul.f32 %v165, %v156
    %v222 = vmul.f32 %v165, %v157
    %v223 = vmul.f32 %v165, %v158
    %v224 = vmul.f32 %v165, %v159
    %v225 = vmul.f32 %v165, %v160
    %v226 = vmul.f32 %v165, %v161
    %v227 = vmul.f32 %v165, %v162
    %v228 = vmul.f32 %v165, %v163
    %v229 = vmul.f32 %v165, %v164
    %v230 = vld [vmem:[%s3] sm:$0x3]
    %v231 = vunpack.c.l.bf16 %v230
    %v232 = vmul.f32 %v165, %v231
    %s233 = sld [smem:[#allocation3 + $0x1]]
    %s234 = scalar_lea.vmem [#allocation8], 256
    %v235 = vld [vmem:[%s234] sm:$0xff]
    %v236 = vld [vmem:[%s234 + $0x8] sm:$0xff]
    %v237 = vld [vmem:[%s234 + $0x10] sm:$0xff]
    %v238 = vld [vmem:[%s234 + $0x18] sm:$0xff]
    %v239 = vld [vmem:[%s234 + $0x20] sm:$0xff]
    %v240 = vld [vmem:[%s234 + $0x28] sm:$0xff]
    %v241 = vld [vmem:[%s234 + $0x30] sm:$0xff]
    %v242 = vld [vmem:[%s234 + $0x38] sm:$0xff]
    %v243 = vld [vmem:[%s234 + $0x40] sm:$0xff]
    %v244 = vld [vmem:[%s234 + $0x48] sm:$0xff]
    %v245 = vld [vmem:[%s234 + $0x50] sm:$0xff]
    %v246 = vld [vmem:[%s234 + $0x58] sm:$0xff]
    %v247 = vld [vmem:[%s234 + $0x60] sm:$0xff]
    %v248 = vld [vmem:[%s234 + $0x68] sm:$0xff]
    %v249 = vld [vmem:[%s234 + $0x70] sm:$0xff]
    %v250 = vld [vmem:[%s234 + $0x78] sm:$0xff]
    %v251 = vld [vmem:[%s234 + $0x80] sm:$0xff]
    %v252 = vld [vmem:[%s234 + $0x88] sm:$0xff]
    %v253 = vld [vmem:[%s234 + $0x90] sm:$0xff]
    %v254 = vld [vmem:[%s234 + $0x98] sm:$0xff]
    %v255 = vld [vmem:[%s234 + $0xa0] sm:$0xff]
    %v256 = vld [vmem:[%s234 + $0xa8] sm:$0xff]
    %v257 = vld [vmem:[%s234 + $0xb0] sm:$0xff]
    %v258 = vld [vmem:[%s234 + $0xb8] sm:$0xff]
    %v259 = vld [vmem:[%s234 + $0xc0] sm:$0xff]
    %v260 = vld [vmem:[%s234 + $0xc8] sm:$0xff]
    %v261 = vld [vmem:[%s234 + $0xd0] sm:$0xff]
    %v262 = vld [vmem:[%s234 + $0xd8] sm:$0xff]
    %v263 = vld [vmem:[%s234 + $0xe0] sm:$0xff]
    %v264 = vld [vmem:[%s234 + $0xe8] sm:$0xff]
    %v265 = vld [vmem:[%s234 + $0xf0] sm:$0xff]
    %v266 = vld [vmem:[%s234 + $0xf8] sm:$0xff]
    %v267 = vunpack.c.l.bf16 %v235
    %v268 = vunpack.c.h.bf16 %v235
    %v269 = vunpack.c.l.bf16 %v236
    %v270 = vunpack.c.h.bf16 %v236
    %v271 = vunpack.c.l.bf16 %v237
    %v272 = vunpack.c.h.bf16 %v237
    %v273 = vunpack.c.l.bf16 %v238
    %v274 = vunpack.c.h.bf16 %v238
    %v275 = vunpack.c.l.bf16 %v239
    %v276 = vunpack.c.h.bf16 %v239
    %v277 = vunpack.c.l.bf16 %v240
    %v278 = vunpack.c.h.bf16 %v240
    %v279 = vunpack.c.l.bf16 %v241
    %v280 = vunpack.c.h.bf16 %v241
    %v281 = vunpack.c.l.bf16 %v242
    %v282 = vunpack.c.h.bf16 %v242
    %v283 = vunpack.c.l.bf16 %v243
    %v284 = vunpack.c.h.bf16 %v243
    %v285 = vunpack.c.l.bf16 %v244
    %v286 = vunpack.c.h.bf16 %v244
    %v287 = vunpack.c.l.bf16 %v245
    %v288 = vunpack.c.h.bf16 %v245
    %v289 = vunpack.c.l.bf16 %v246
    %v290 = vunpack.c.h.bf16 %v246
    %v291 = vunpack.c.l.bf16 %v247
    %v292 = vunpack.c.h.bf16 %v247
    %v293 = vunpack.c.l.bf16 %v248
    %v294 = vunpack.c.h.bf16 %v248
    %v295 = vunpack.c.l.bf16 %v249
    %v296 = vunpack.c.h.bf16 %v249
    %v297 = vunpack.c.l.bf16 %v250
    %v298 = vunpack.c.h.bf16 %v250
    %v299 = vunpack.c.l.bf16 %v251
    %v300 = vunpack.c.h.bf16 %v251
    %v301 = vunpack.c.l.bf16 %v252
    %v302 = vunpack.c.h.bf16 %v252
    %v303 = vunpack.c.l.bf16 %v253
    %v304 = vunpack.c.h.bf16 %v253
    %v305 = vunpack.c.l.bf16 %v254
    %v306 = vunpack.c.h.bf16 %v254
    %v307 = vunpack.c.l.bf16 %v255
    %v308 = vunpack.c.h.bf16 %v255
    %v309 = vunpack.c.l.bf16 %v256
    %v310 = vunpack.c.h.bf16 %v256
    %v311 = vunpack.c.l.bf16 %v257
    %v312 = vunpack.c.h.bf16 %v257
    %v313 = vunpack.c.l.bf16 %v258
    %v314 = vunpack.c.h.bf16 %v258
    %v315 = vunpack.c.l.bf16 %v259
    %v316 = vunpack.c.h.bf16 %v259
    %v317 = vunpack.c.l.bf16 %v260
    %v318 = vunpack.c.h.bf16 %v260
    %v319 = vunpack.c.l.bf16 %v261
    %v320 = vunpack.c.h.bf16 %v261
    %v321 = vunpack.c.l.bf16 %v262
    %v322 = vunpack.c.h.bf16 %v262
    %v323 = vunpack.c.l.bf16 %v263
    %v324 = vunpack.c.h.bf16 %v263
    %v325 = vunpack.c.l.bf16 %v264
    %v326 = vunpack.c.h.bf16 %v264
    %v327 = vunpack.c.l.bf16 %v265
    %v328 = vunpack.c.h.bf16 %v265
    %v329 = vunpack.c.l.bf16 %v266
    %v330 = vunpack.c.h.bf16 %v266
    %v331 = vstv %s233
    %v332 = vmul.f32 %v331, %v267
    %v333 = vmul.f32 %v331, %v268
    %v334 = vmul.f32 %v331, %v269
    %v335 = vmul.f32 %v331, %v270
    %v336 = vmul.f32 %v331, %v271
    %v337 = vmul.f32 %v331, %v272
    %v338 = vmul.f32 %v331, %v273
    %v339 = vmul.f32 %v331, %v274
    %v340 = vmul.f32 %v331, %v275
    %v341 = vmul.f32 %v331, %v276
    %v342 = vmul.f32 %v331, %v277
    %v343 = vmul.f32 %v331, %v278
    %v344 = vmul.f32 %v331, %v279
    %v345 = vmul.f32 %v331, %v280
    %v346 = vmul.f32 %v331, %v281
    %v347 = vmul.f32 %v331, %v282
    %v348 = vmul.f32 %v331, %v283
    %v349 = vmul.f32 %v331, %v284
    %v350 = vmul.f32 %v331, %v285
    %v351 = vmul.f32 %v331, %v286
    %v352 = vmul.f32 %v331, %v287
    %v353 = vmul.f32 %v331, %v288
    %v354 = vmul.f32 %v331, %v289
    %v355 = vmul.f32 %v331, %v290
    %v356 = vmul.f32 %v331, %v291
    %v357 = vmul.f32 %v331, %v292
    %v358 = vmul.f32 %v331, %v293
    %v359 = vmul.f32 %v331, %v294
    %v360 = vmul.f32 %v331, %v295
    %v361 = vmul.f32 %v331, %v296
    %v362 = vmul.f32 %v331, %v297
    %v363 = vmul.f32 %v331, %v298
    %v364 = vmul.f32 %v331, %v299
    %v365 = vmul.f32 %v331, %v300
    %v366 = vmul.f32 %v331, %v301
    %v367 = vmul.f32 %v331, %v302
    %v368 = vmul.f32 %v331, %v303
    %v369 = vmul.f32 %v331, %v304
    %v370 = vmul.f32 %v331, %v305
    %v371 = vmul.f32 %v331, %v306
    %v372 = vmul.f32 %v331, %v307
    %v373 = vmul.f32 %v331, %v308
    %v374 = vmul.f32 %v331, %v309
    %v375 = vmul.f32 %v331, %v310
    %v376 = vmul.f32 %v331, %v311
    %v377 = vmul.f32 %v331, %v312
    %v378 = vmul.f32 %v331, %v313
    %v379 = vmul.f32 %v331, %v314
    %v380 = vmul.f32 %v331, %v315
    %v381 = vmul.f32 %v331, %v316
    %v382 = vmul.f32 %v331, %v317
    %v383 = vmul.f32 %v331, %v318
    %v384 = vmul.f32 %v331, %v319
    %v385 = vmul.f32 %v331, %v320
    %v386 = vmul.f32 %v331, %v321
    %v387 = vmul.f32 %v331, %v322
    %v388 = vmul.f32 %v331, %v323
    %v389 = vmul.f32 %v331, %v324
    %v390 = vmul.f32 %v331, %v325
    %v391 = vmul.f32 %v331, %v326
    %v392 = vmul.f32 %v331, %v327
    %v393 = vmul.f32 %v331, %v328
    %v394 = vmul.f32 %v331, %v329
    %v395 = vmul.f32 %v331, %v330
    %v396 = vadd.f32 %v166, %v332
    %v397 = vadd.f32 %v167, %v333
    %v398 = vadd.f32 %v168, %v334
    %v399 = vadd.f32 %v169, %v335
    %v400 = vadd.f32 %v170, %v336
    %v401 = vadd.f32 %v171, %v337
    %v402 = vadd.f32 %v172, %v338
    %v403 = vadd.f32 %v173, %v339
    %v404 = vadd.f32 %v174, %v340
    %v405 = vadd.f32 %v175, %v341
    %v406 = vadd.f32 %v176, %v342
    %v407 = vadd.f32 %v177, %v343
    %v408 = vadd.f32 %v178, %v344
    %v409 = vadd.f32 %v179, %v345
    %v410 = vadd.f32 %v180, %v346
    %v411 = vadd.f32 %v181, %v347
    %v412 = vadd.f32 %v182, %v348
    %v413 = vadd.f32 %v183, %v349
    %v414 = vadd.f32 %v184, %v350
    %v415 = vadd.f32 %v185, %v351
    %v416 = vadd.f32 %v186, %v352
    %v417 = vadd.f32 %v187, %v353
    %v418 = vadd.f32 %v188, %v354
    %v419 = vadd.f32 %v189, %v355
    %v420 = vadd.f32 %v190, %v356
    %v421 = vadd.f32 %v191, %v357
    %v422 = vadd.f32 %v192, %v358
    %v423 = vadd.f32 %v193, %v359
    %v424 = vadd.f32 %v194, %v360
    %v425 = vadd.f32 %v195, %v361
    %v426 = vadd.f32 %v196, %v362
    %v427 = vadd.f32 %v197, %v363
    %v428 = vadd.f32 %v198, %v364
    %v429 = vadd.f32 %v199, %v365
    %v430 = vadd.f32 %v200, %v366
    %v431 = vadd.f32 %v201, %v367
    %v432 = vadd.f32 %v202, %v368
    %v433 = vadd.f32 %v203, %v369
    %v434 = vadd.f32 %v204, %v370
    %v435 = vadd.f32 %v205, %v371
    %v436 = vadd.f32 %v206, %v372
    %v437 = vadd.f32 %v207, %v373
    %v438 = vadd.f32 %v208, %v374
    %v439 = vadd.f32 %v209, %v375
    %v440 = vadd.f32 %v210, %v376
    %v441 = vadd.f32 %v211, %v377
    %v442 = vadd.f32 %v212, %v378
    %v443 = vadd.f32 %v213, %v379
    %v444 = vadd.f32 %v214, %v380
    %v445 = vadd.f32 %v215, %v381
    %v446 = vadd.f32 %v216, %v382
    %v447 = vadd.f32 %v217, %v383
    %v448 = vadd.f32 %v218, %v384
    %v449 = vadd.f32 %v219, %v385
    %v450 = vadd.f32 %v220, %v386
    %v451 = vadd.f32 %v221, %v387
    %v452 = vadd.f32 %v222, %v388
    %v453 = vadd.f32 %v223, %v389
    %v454 = vadd.f32 %v224, %v390
    %v455 = vadd.f32 %v225, %v391
    %v456 = vadd.f32 %v226, %v392
    %v457 = vadd.f32 %v227, %v393
    %v458 = vadd.f32 %v228, %v394
    %v459 = vadd.f32 %v229, %v395
    %s460 = scalar_lea.vmem %s3, 2
    %v461 = vld [vmem:[%s460] sm:$0x3]
    %v462 = vunpack.c.l.bf16 %v461
    %v463 = vmul.f32 %v331, %v462
    %v464 = vadd.f32 %v232, %v463
    %s465 = sld [smem:[#allocation3 + $0x2]]
    %s466 = scalar_lea.vmem [#allocation8], 512
    %v467 = vld [vmem:[%s466] sm:$0xff]
    %v468 = vld [vmem:[%s466 + $0x8] sm:$0xff]
    %v469 = vld [vmem:[%s466 + $0x10] sm:$0xff]
    %v470 = vld [vmem:[%s466 + $0x18] sm:$0xff]
    %v471 = vld [vmem:[%s466 + $0x20] sm:$0xff]
    %v472 = vld [vmem:[%s466 + $0x28] sm:$0xff]
    %v473 = vld [vmem:[%s466 + $0x30] sm:$0xff]
    %v474 = vld [vmem:[%s466 + $0x38] sm:$0xff]
    %v475 = vld [vmem:[%s466 + $0x40] sm:$0xff]
    %v476 = vld [vmem:[%s466 + $0x48] sm:$0xff]
    %v477 = vld [vmem:[%s466 + $0x50] sm:$0xff]
    %v478 = vld [vmem:[%s466 + $0x58] sm:$0xff]
    %v479 = vld [vmem:[%s466 + $0x60] sm:$0xff]
    %v480 = vld [vmem:[%s466 + $0x68] sm:$0xff]
    %v481 = vld [vmem:[%s466 + $0x70] sm:$0xff]
    %v482 = vld [vmem:[%s466 + $0x78] sm:$0xff]
    %v483 = vld [vmem:[%s466 + $0x80] sm:$0xff]
    %v484 = vld [vmem:[%s466 + $0x88] sm:$0xff]
    %v485 = vld [vmem:[%s466 + $0x90] sm:$0xff]
    %v486 = vld [vmem:[%s466 + $0x98] sm:$0xff]
    %v487 = vld [vmem:[%s466 + $0xa0] sm:$0xff]
    %v488 = vld [vmem:[%s466 + $0xa8] sm:$0xff]
    %v489 = vld [vmem:[%s466 + $0xb0] sm:$0xff]
    %v490 = vld [vmem:[%s466 + $0xb8] sm:$0xff]
    %v491 = vld [vmem:[%s466 + $0xc0] sm:$0xff]
    %v492 = vld [vmem:[%s466 + $0xc8] sm:$0xff]
    %v493 = vld [vmem:[%s466 + $0xd0] sm:$0xff]
    %v494 = vld [vmem:[%s466 + $0xd8] sm:$0xff]
    %v495 = vld [vmem:[%s466 + $0xe0] sm:$0xff]
    %v496 = vld [vmem:[%s466 + $0xe8] sm:$0xff]
    %v497 = vld [vmem:[%s466 + $0xf0] sm:$0xff]
    %v498 = vld [vmem:[%s466 + $0xf8] sm:$0xff]
    %v499 = vunpack.c.l.bf16 %v467
    %v500 = vunpack.c.h.bf16 %v467
    %v501 = vunpack.c.l.bf16 %v468
    %v502 = vunpack.c.h.bf16 %v468
    %v503 = vunpack.c.l.bf16 %v469
    %v504 = vunpack.c.h.bf16 %v469
    %v505 = vunpack.c.l.bf16 %v470
    %v506 = vunpack.c.h.bf16 %v470
    %v507 = vunpack.c.l.bf16 %v471
    %v508 = vunpack.c.h.bf16 %v471
    %v509 = vunpack.c.l.bf16 %v472
    %v510 = vunpack.c.h.bf16 %v472
    %v511 = vunpack.c.l.bf16 %v473
    %v512 = vunpack.c.h.bf16 %v473
    %v513 = vunpack.c.l.bf16 %v474
    %v514 = vunpack.c.h.bf16 %v474
    %v515 = vunpack.c.l.bf16 %v475
    %v516 = vunpack.c.h.bf16 %v475
    %v517 = vunpack.c.l.bf16 %v476
    %v518 = vunpack.c.h.bf16 %v476
    %v519 = vunpack.c.l.bf16 %v477
    %v520 = vunpack.c.h.bf16 %v477
    %v521 = vunpack.c.l.bf16 %v478
    %v522 = vunpack.c.h.bf16 %v478
    %v523 = vunpack.c.l.bf16 %v479
    %v524 = vunpack.c.h.bf16 %v479
    %v525 = vunpack.c.l.bf16 %v480
    %v526 = vunpack.c.h.bf16 %v480
    %v527 = vunpack.c.l.bf16 %v481
    %v528 = vunpack.c.h.bf16 %v481
    %v529 = vunpack.c.l.bf16 %v482
    %v530 = vunpack.c.h.bf16 %v482
    %v531 = vunpack.c.l.bf16 %v483
    %v532 = vunpack.c.h.bf16 %v483
    %v533 = vunpack.c.l.bf16 %v484
    %v534 = vunpack.c.h.bf16 %v484
    %v535 = vunpack.c.l.bf16 %v485
    %v536 = vunpack.c.h.bf16 %v485
    %v537 = vunpack.c.l.bf16 %v486
    %v538 = vunpack.c.h.bf16 %v486
    %v539 = vunpack.c.l.bf16 %v487
    %v540 = vunpack.c.h.bf16 %v487
    %v541 = vunpack.c.l.bf16 %v488
    %v542 = vunpack.c.h.bf16 %v488
    %v543 = vunpack.c.l.bf16 %v489
    %v544 = vunpack.c.h.bf16 %v489
    %v545 = vunpack.c.l.bf16 %v490
    %v546 = vunpack.c.h.bf16 %v490
    %v547 = vunpack.c.l.bf16 %v491
    %v548 = vunpack.c.h.bf16 %v491
    %v549 = vunpack.c.l.bf16 %v492
    %v550 = vunpack.c.h.bf16 %v492
    %v551 = vunpack.c.l.bf16 %v493
    %v552 = vunpack.c.h.bf16 %v493
    %v553 = vunpack.c.l.bf16 %v494
    %v554 = vunpack.c.h.bf16 %v494
    %v555 = vunpack.c.l.bf16 %v495
    %v556 = vunpack.c.h.bf16 %v495
    %v557 = vunpack.c.l.bf16 %v496
    %v558 = vunpack.c.h.bf16 %v496
    %v559 = vunpack.c.l.bf16 %v497
    %v560 = vunpack.c.h.bf16 %v497
    %v561 = vunpack.c.l.bf16 %v498
    %v562 = vunpack.c.h.bf16 %v498
    %v563 = vstv %s465
    %v564 = vmul.f32 %v563, %v499
    %v565 = vmul.f32 %v563, %v500
    %v566 = vmul.f32 %v563, %v501
    %v567 = vmul.f32 %v563, %v502
    %v568 = vmul.f32 %v563, %v503
    %v569 = vmul.f32 %v563, %v504
    %v570 = vmul.f32 %v563, %v505
    %v571 = vmul.f32 %v563, %v506
    %v572 = vmul.f32 %v563, %v507
    %v573 = vmul.f32 %v563, %v508
    %v574 = vmul.f32 %v563, %v509
    %v575 = vmul.f32 %v563, %v510
    %v576 = vmul.f32 %v563, %v511
    %v577 = vmul.f32 %v563, %v512
    %v578 = vmul.f32 %v563, %v513
    %v579 = vmul.f32 %v563, %v514
    %v580 = vmul.f32 %v563, %v515
    %v581 = vmul.f32 %v563, %v516
    %v582 = vmul.f32 %v563, %v517
    %v583 = vmul.f32 %v563, %v518
    %v584 = vmul.f32 %v563, %v519
    %v585 = vmul.f32 %v563, %v520
    %v586 = vmul.f32 %v563, %v521
    %v587 = vmul.f32 %v563, %v522
    %v588 = vmul.f32 %v563, %v523
    %v589 = vmul.f32 %v563, %v524
    %v590 = vmul.f32 %v563, %v525
    %v591 = vmul.f32 %v563, %v526
    %v592 = vmul.f32 %v563, %v527
    %v593 = vmul.f32 %v563, %v528
    %v594 = vmul.f32 %v563, %v529
    %v595 = vmul.f32 %v563, %v530
    %v596 = vmul.f32 %v563, %v531
    %v597 = vmul.f32 %v563, %v532
    %v598 = vmul.f32 %v563, %v533
    %v599 = vmul.f32 %v563, %v534
    %v600 = vmul.f32 %v563, %v535
    %v601 = vmul.f32 %v563, %v536
    %v602 = vmul.f32 %v563, %v537
    %v603 = vmul.f32 %v563, %v538
    %v604 = vmul.f32 %v563, %v539
    %v605 = vmul.f32 %v563, %v540
    %v606 = vmul.f32 %v563, %v541
    %v607 = vmul.f32 %v563, %v542
    %v608 = vmul.f32 %v563, %v543
    %v609 = vmul.f32 %v563, %v544
    %v610 = vmul.f32 %v563, %v545
    %v611 = vmul.f32 %v563, %v546
    %v612 = vmul.f32 %v563, %v547
    %v613 = vmul.f32 %v563, %v548
    %v614 = vmul.f32 %v563, %v549
    %v615 = vmul.f32 %v563, %v550
    %v616 = vmul.f32 %v563, %v551
    %v617 = vmul.f32 %v563, %v552
    %v618 = vmul.f32 %v563, %v553
    %v619 = vmul.f32 %v563, %v554
    %v620 = vmul.f32 %v563, %v555
    %v621 = vmul.f32 %v563, %v556
    %v622 = vmul.f32 %v563, %v557
    %v623 = vmul.f32 %v563, %v558
    %v624 = vmul.f32 %v563, %v559
    %v625 = vmul.f32 %v563, %v560
    %v626 = vmul.f32 %v563, %v561
    %v627 = vmul.f32 %v563, %v562
    %v628 = vadd.f32 %v396, %v564
    %v629 = vadd.f32 %v397, %v565
    %v630 = vadd.f32 %v398, %v566
    %v631 = vadd.f32 %v399, %v567
    %v632 = vadd.f32 %v400, %v568
    %v633 = vadd.f32 %v401, %v569
    %v634 = vadd.f32 %v402, %v570
    %v635 = vadd.f32 %v403, %v571
    %v636 = vadd.f32 %v404, %v572
    %v637 = vadd.f32 %v405, %v573
    %v638 = vadd.f32 %v406, %v574
    %v639 = vadd.f32 %v407, %v575
    %v640 = vadd.f32 %v408, %v576
    %v641 = vadd.f32 %v409, %v577
    %v642 = vadd.f32 %v410, %v578
    %v643 = vadd.f32 %v411, %v579
    %v644 = vadd.f32 %v412, %v580
    %v645 = vadd.f32 %v413, %v581
    %v646 = vadd.f32 %v414, %v582
    %v647 = vadd.f32 %v415, %v583
    %v648 = vadd.f32 %v416, %v584
    %v649 = vadd.f32 %v417, %v585
    %v650 = vadd.f32 %v418, %v586
    %v651 = vadd.f32 %v419, %v587
    %v652 = vadd.f32 %v420, %v588
    %v653 = vadd.f32 %v421, %v589
    %v654 = vadd.f32 %v422, %v590
    %v655 = vadd.f32 %v423, %v591
    %v656 = vadd.f32 %v424, %v592
    %v657 = vadd.f32 %v425, %v593
    %v658 = vadd.f32 %v426, %v594
    %v659 = vadd.f32 %v427, %v595
    %v660 = vadd.f32 %v428, %v596
    %v661 = vadd.f32 %v429, %v597
    %v662 = vadd.f32 %v430, %v598
    %v663 = vadd.f32 %v431, %v599
    %v664 = vadd.f32 %v432, %v600
    %v665 = vadd.f32 %v433, %v601
    %v666 = vadd.f32 %v434, %v602
    %v667 = vadd.f32 %v435, %v603
    %v668 = vadd.f32 %v436, %v604
    %v669 = vadd.f32 %v437, %v605
    %v670 = vadd.f32 %v438, %v606
    %v671 = vadd.f32 %v439, %v607
    %v672 = vadd.f32 %v440, %v608
    %v673 = vadd.f32 %v441, %v609
    %v674 = vadd.f32 %v442, %v610
    %v675 = vadd.f32 %v443, %v611
    %v676 = vadd.f32 %v444, %v612
    %v677 = vadd.f32 %v445, %v613
    %v678 = vadd.f32 %v446, %v614
    %v679 = vadd.f32 %v447, %v615
    %v680 = vadd.f32 %v448, %v616
    %v681 = vadd.f32 %v449, %v617
    %v682 = vadd.f32 %v450, %v618
    %v683 = vadd.f32 %v451, %v619
    %v684 = vadd.f32 %v452, %v620
    %v685 = vadd.f32 %v453, %v621
    %v686 = vadd.f32 %v454, %v622
    %v687 = vadd.f32 %v455, %v623
    %v688 = vadd.f32 %v456, %v624
    %v689 = vadd.f32 %v457, %v625
    %v690 = vadd.f32 %v458, %v626
    %v691 = vadd.f32 %v459, %v627
    %s692 = scalar_lea.vmem %s3, 4
    %v693 = vld [vmem:[%s692] sm:$0x3]
    %v694 = vunpack.c.l.bf16 %v693
    %v695 = vmul.f32 %v563, %v694
    %v696 = vadd.f32 %v464, %v695
    %p697 = scmp.eq.s32.totalorder 0, 0
    // Predicated region
    $region30: #{tpu_custom_call.1} parent=1 // pred_check
      %p698 = pneg %p697
    $region31: #{tpu_custom_call.1} parent=1 // pred_check_branch
      %700 = sbr.rel (%p698) target = $region33
    $region32: #{tpu_custom_call.1} parent=1 // pred_region
      %701 = vst [vmem:[#allocation2] sm:$0xff] 0.0
      %702 = vst [vmem:[#allocation2 + $0x8] sm:$0xff] 0.0
      %703 = vst [vmem:[#allocation2 + $0x10] sm:$0xff] 0.0
      %704 = vst [vmem:[#allocation2 + $0x18] sm:$0xff] 0.0
      %705 = vst [vmem:[#allocation2 + $0x20] sm:$0xff] 0.0
      %706 = vst [vmem:[#allocation2 + $0x28] sm:$0xff] 0.0
    $region33: #{tpu_custom_call.1} parent=1 // pred_fallthru
      _
    %v707 = vld [vmem:[#allocation2] sm:$0xff]
    %v708 = vld [vmem:[#allocation2 + $0x8] sm:$0xff]
    %v709 = vld [vmem:[#allocation2 + $0x10] sm:$0xff]
    %v710 = vld [vmem:[#allocation2 + $0x18] sm:$0xff]
    %v711 = vld [vmem:[#allocation2 + $0x20] sm:$0xff]
    %v712 = vld [vmem:[#allocation2 + $0x28] sm:$0xff]
    %v713 = vld [vmem:[#allocation7] sm:$0xff]
    %v714 = vld [vmem:[#allocation7 + $0x8] sm:$0xff]
    %v715 = vld [vmem:[#allocation7 + $0x10] sm:$0xff]
    %v716 = vpack.c.bf16 %v630, %v628
    %v717 = vpack.c.bf16 %v631, %v629
    %v718 = vpack.c.bf16 %v634, %v632
    %v719 = vpack.c.bf16 %v635, %v633
    %v720 = vpack.c.bf16 %v638, %v636
    %v721 = vpack.c.bf16 %v639, %v637
    %v722 = vpack.c.bf16 %v642, %v640
    %v723 = vpack.c.bf16 %v643, %v641
    %v724 = vpack.c.bf16 %v646, %v644
    %v725 = vpack.c.bf16 %v647, %v645
    %v726 = vpack.c.bf16 %v650, %v648
    %v727 = vpack.c.bf16 %v651, %v649
    %v728 = vpack.c.bf16 %v654, %v652
    %v729 = vpack.c.bf16 %v655, %v653
    %v730 = vpack.c.bf16 %v658, %v656
    %v731 = vpack.c.bf16 %v659, %v657
    %v732 = vpack.c.bf16 %v662, %v660
    %v733 = vpack.c.bf16 %v663, %v661
    %v734 = vpack.c.bf16 %v666, %v664
    %v735 = vpack.c.bf16 %v667, %v665
    %v736 = vpack.c.bf16 %v670, %v668
    %v737 = vpack.c.bf16 %v671, %v669
    %v738 = vpack.c.bf16 %v674, %v672
    %v739 = vpack.c.bf16 %v675, %v673
    %v740 = vpack.c.bf16 %v678, %v676
    %v741 = vpack.c.bf16 %v679, %v677
    %v742 = vpack.c.bf16 %v682, %v680
    %v743 = vpack.c.bf16 %v683, %v681
    %v744 = vpack.c.bf16 %v686, %v684
    %v745 = vpack.c.bf16 %v687, %v685
    %v746 = vpack.c.bf16 %v690, %v688
    %v747 = vpack.c.bf16 %v691, %v689
    %v751 = vunpack.c.l.b16 %v713
    %v752 = vunpack.c.h.b16 %v713
    %v753 = vunpack.c.l.b16 %v714
    %v754 = vunpack.c.h.b16 %v714
    %v755 = vunpack.c.l.b16 %v715
    %v756 = vunpack.c.h.b16 %v715
    %v757 = vpack.c.b16 %v753, %v751
    %v758 = vpack.c.b16 %v754, %v752
    %v759 = vpack.c.b16 %v755, %v755
    %v760 = vpack.c.b16 %v756, %v756
    %765 = vmatpush.bf16.msra.mxu0 %v730
    %766 = vmatpush.bf16.msra.mxu0 %v728
    %767 = vmatpush.bf16.msra.mxu0 %v726
    %768 = vmatpush.bf16.msra.mxu0 %v724
    %769 = vmatpush.bf16.msra.mxu0 %v722
    %770 = vmatpush.bf16.msra.mxu0 %v720
    %771 = vmatpush.bf16.msra.mxu0 %v718
    %772 = vmatpush.bf16.msra.mxu0 %v716
    %773 = vmatmul.bf16.gmra.mxu0 %v757
    %v774 = vpop.f32.mrf.mxu0
    %v775 = vadd.f32 0.0, %v774
    %v776 = vpop.f32.mrf.mxu0
    %v777 = vadd.f32 0.0, %v776
    %778 = vmatmul.bf16.gmra.mxu0 %v759
    %v779 = vpop.f32.mrf.mxu0
    %v780 = vadd.f32 0.0, %v779
    %v781 = vpop.f32.mrf.mxu0
    %782 = vdwg.mxu0
    %783 = vmatpush.bf16.msra.mxu0 %v746
    %784 = vmatpush.bf16.msra.mxu0 %v744
    %785 = vmatpush.bf16.msra.mxu0 %v742
    %786 = vmatpush.bf16.msra.mxu0 %v740
    %787 = vmatpush.bf16.msra.mxu0 %v738
    %788 = vmatpush.bf16.msra.mxu0 %v736
    %789 = vmatpush.bf16.msra.mxu0 %v734
    %790 = vmatpush.bf16.msra.mxu0 %v732
    %791 = vmatmul.bf16.gmra.mxu0 %v758
    %v792 = vpop.f32.mrf.mxu0
    %v793 = vadd.f32 %v775, %v792
    %v794 = vpop.f32.mrf.mxu0
    %v795 = vadd.f32 %v777, %v794
    %796 = vmatmul.bf16.gmra.mxu0 %v760
    %v797 = vpop.f32.mrf.mxu0
    %v798 = vadd.f32 %v780, %v797
    %v799 = vpop.f32.mrf.mxu0
    %800 = vdwg.mxu0
    %801 = vmatpush.bf16.msra.mxu0 %v731
    %802 = vmatpush.bf16.msra.mxu0 %v729
    %803 = vmatpush.bf16.msra.mxu0 %v727
    %804 = vmatpush.bf16.msra.mxu0 %v725
    %805 = vmatpush.bf16.msra.mxu0 %v723
    %806 = vmatpush.bf16.msra.mxu0 %v721
    %807 = vmatpush.bf16.msra.mxu0 %v719
    %808 = vmatpush.bf16.msra.mxu0 %v717
    %809 = vmatmul.bf16.gmra.mxu0 %v757
    %v810 = vpop.f32.mrf.mxu0
    %v811 = vadd.f32 0.0, %v810
    %v812 = vpop.f32.mrf.mxu0
    %v813 = vadd.f32 0.0, %v812
    %814 = vmatmul.bf16.gmra.mxu0 %v759
    %v815 = vpop.f32.mrf.mxu0
    %v816 = vadd.f32 0.0, %v815
    %v817 = vpop.f32.mrf.mxu0
    %818 = vdwg.mxu0
    %819 = vmatpush.bf16.msra.mxu0 %v747
    %820 = vmatpush.bf16.msra.mxu0 %v745
    %821 = vmatpush.bf16.msra.mxu0 %v743
    %822 = vmatpush.bf16.msra.mxu0 %v741
    %823 = vmatpush.bf16.msra.mxu0 %v739
    %824 = vmatpush.bf16.msra.mxu0 %v737
    %825 = vmatpush.bf16.msra.mxu0 %v735
    %826 = vmatpush.bf16.msra.mxu0 %v733
    %827 = vmatmul.bf16.gmra.mxu0 %v758
    %v828 = vpop.f32.mrf.mxu0
    %v829 = vadd.f32 %v811, %v828
    %v830 = vpop.f32.mrf.mxu0
    %v831 = vadd.f32 %v813, %v830
    %832 = vmatmul.bf16.gmra.mxu0 %v760
    %v833 = vpop.f32.mrf.mxu0
    %v834 = vadd.f32 %v816, %v833
    %v835 = vpop.f32.mrf.mxu0
    %836 = vdwg.mxu0
    %v837 = vadd.f32 %v707, %v793
    %v838 = vadd.f32 %v708, %v829
    %v839 = vadd.f32 %v709, %v795
    %v840 = vadd.f32 %v710, %v831
    %v841 = vadd.f32 %v711, %v798
    %v842 = vadd.f32 %v712, %v834
    %843 = vst [vmem:[#allocation2] sm:$0xff] %v837
    %844 = vst [vmem:[#allocation2 + $0x8] sm:$0xff] %v838
    %845 = vst [vmem:[#allocation2 + $0x10] sm:$0xff] %v839
    %846 = vst [vmem:[#allocation2 + $0x18] sm:$0xff] %v840
    %847 = vst [vmem:[#allocation2 + $0x20] sm:$0xff] %v841
    %848 = vst [vmem:[#allocation2 + $0x28] sm:$0xff] %v842
    // Predicated region
    $region34: #{tpu_custom_call.1} parent=1 // pred_check
      %p849 = pneg %p697
    $region35: #{tpu_custom_call.1} parent=1 // pred_check_branch
      %851 = sbr.rel (%p849) target = $region37
    $region36: #{tpu_custom_call.1} parent=1 // pred_region
      %v852 = vld [vmem:[#allocation2] sm:$0xff]
      %v853 = vld [vmem:[#allocation2 + $0x8] sm:$0xff]
      %v854 = vld [vmem:[#allocation2 + $0x10] sm:$0xff]
      %v855 = vld [vmem:[#allocation2 + $0x18] sm:$0xff]
      %v856 = vld [vmem:[#allocation2 + $0x20] sm:$0xff]
      %v857 = vld [vmem:[#allocation2 + $0x28] sm:$0xff]
      %v859 = vperm.slane %v696, 0
      %v860 = vperm.slane %v696, 2
      %v863 = vperm.slane %v859, 0
      %v864 = vperm.slane %v860, 0
      %v865 = vadd.f32 %v852, %v863
      %v866 = vadd.f32 %v853, %v864
      %v867 = vadd.f32 %v854, %v863
      %v868 = vadd.f32 %v855, %v864
      %v869 = vadd.f32 %v856, %v863
      %v870 = vadd.f32 %v857, %v864
      %871 = vst [vmem:[#allocation10] sm:$0xff] %v865
      %872 = vst [vmem:[#allocation10 + $0x8] sm:$0xff] %v866
      %873 = vst [vmem:[#allocation10 + $0x10] sm:$0xff] %v867
      %874 = vst [vmem:[#allocation10 + $0x18] sm:$0xff] %v868
      %875 = vst [vmem:[#allocation10 + $0x20] sm:$0xff] %v869
      %876 = vst [vmem:[#allocation10 + $0x28] sm:$0xff] %v870
    $region37: #{tpu_custom_call.1} parent=1 // pred_fallthru
      _
    %v877 = vmul.f32 %v628, %v628
    %v878 = vmul.f32 %v629, %v629
    %v879 = vmul.f32 %v630, %v630
    %v880 = vmul.f32 %v631, %v631
    %v881 = vmul.f32 %v632, %v632
    %v882 = vmul.f32 %v633, %v633
    %v883 = vmul.f32 %v634, %v634
    %v884 = vmul.f32 %v635, %v635
    %v885 = vmul.f32 %v636, %v636
    %v886 = vmul.f32 %v637, %v637
    %v887 = vmul.f32 %v638, %v638
    %v888 = vmul.f32 %v639, %v639
    %v889 = vmul.f32 %v640, %v640
    %v890 = vmul.f32 %v641, %v641
    %v891 = vmul.f32 %v642, %v642
    %v892 = vmul.f32 %v643, %v643
    %v893 = vmul.f32 %v644, %v644
    %v894 = vmul.f32 %v645, %v645
    %v895 = vmul.f32 %v646, %v646
    %v896 = vmul.f32 %v647, %v647
    %v897 = vmul.f32 %v648, %v648
    %v898 = vmul.f32 %v649, %v649
    %v899 = vmul.f32 %v650, %v650
    %v900 = vmul.f32 %v651, %v651
    %v901 = vmul.f32 %v652, %v652
    %v902 = vmul.f32 %v653, %v653
    %v903 = vmul.f32 %v654, %v654
    %v904 = vmul.f32 %v655, %v655
    %v905 = vmul.f32 %v656, %v656
    %v906 = vmul.f32 %v657, %v657
    %v907 = vmul.f32 %v658, %v658
    %v908 = vmul.f32 %v659, %v659
    %v909 = vmul.f32 %v660, %v660
    %v910 = vmul.f32 %v661, %v661
    %v911 = vmul.f32 %v662, %v662
    %v912 = vmul.f32 %v663, %v663
    %v913 = vmul.f32 %v664, %v664
    %v914 = vmul.f32 %v665, %v665
    %v915 = vmul.f32 %v666, %v666
    %v916 = vmul.f32 %v667, %v667
    %v917 = vmul.f32 %v668, %v668
    %v918 = vmul.f32 %v669, %v669
    %v919 = vmul.f32 %v670, %v670
    %v920 = vmul.f32 %v671, %v671
    %v921 = vmul.f32 %v672, %v672
    %v922 = vmul.f32 %v673, %v673
    %v923 = vmul.f32 %v674, %v674
    %v924 = vmul.f32 %v675, %v675
    %v925 = vmul.f32 %v676, %v676
    %v926 = vmul.f32 %v677, %v677
    %v927 = vmul.f32 %v678, %v678
    %v928 = vmul.f32 %v679, %v679
    %v929 = vmul.f32 %v680, %v680
    %v930 = vmul.f32 %v681, %v681
    %v931 = vmul.f32 %v682, %v682
    %v932 = vmul.f32 %v683, %v683
    %v933 = vmul.f32 %v684, %v684
    %v934 = vmul.f32 %v685, %v685
    %v935 = vmul.f32 %v686, %v686
    %v936 = vmul.f32 %v687, %v687
    %v937 = vmul.f32 %v688, %v688
    %v938 = vmul.f32 %v689, %v689
    %v939 = vmul.f32 %v690, %v690
    %v940 = vmul.f32 %v691, %v691
    %v941 = vadd.f32 %v877, %v878
    %v942 = vadd.f32 %v941, %v879
    %v943 = vadd.f32 %v942, %v880
    %v944 = vadd.f32 %v943, %v881
    %v945 = vadd.f32 %v944, %v882
    %v946 = vadd.f32 %v945, %v883
    %v947 = vadd.f32 %v946, %v884
    %v948 = vadd.f32 %v947, %v885
    %v949 = vadd.f32 %v948, %v886
    %v950 = vadd.f32 %v949, %v887
    %v951 = vadd.f32 %v950, %v888
    %v952 = vadd.f32 %v951, %v889
    %v953 = vadd.f32 %v952, %v890
    %v954 = vadd.f32 %v953, %v891
    %v955 = vadd.f32 %v954, %v892
    %v956 = vadd.f32 %v955, %v893
    %v957 = vadd.f32 %v956, %v894
    %v958 = vadd.f32 %v957, %v895
    %v959 = vadd.f32 %v958, %v896
    %v960 = vadd.f32 %v959, %v897
    %v961 = vadd.f32 %v960, %v898
    %v962 = vadd.f32 %v961, %v899
    %v963 = vadd.f32 %v962, %v900
    %v964 = vadd.f32 %v963, %v901
    %v965 = vadd.f32 %v964, %v902
    %v966 = vadd.f32 %v965, %v903
    %v967 = vadd.f32 %v966, %v904
    %v968 = vadd.f32 %v967, %v905
    %v969 = vadd.f32 %v968, %v906
    %v970 = vadd.f32 %v969, %v907
    %v971 = vadd.f32 %v970, %v908
    %v972 = vadd.f32 %v971, %v909
    %v973 = vadd.f32 %v972, %v910
    %v974 = vadd.f32 %v973, %v911
    %v975 = vadd.f32 %v974, %v912
    %v976 = vadd.f32 %v975, %v913
    %v977 = vadd.f32 %v976, %v914
    %v978 = vadd.f32 %v977, %v915
    %v979 = vadd.f32 %v978, %v916
    %v980 = vadd.f32 %v979, %v917
    %v981 = vadd.f32 %v980, %v918
    %v982 = vadd.f32 %v981, %v919
    %v983 = vadd.f32 %v982, %v920
    %v984 = vadd.f32 %v983, %v921
    %v985 = vadd.f32 %v984, %v922
    %v986 = vadd.f32 %v985, %v923
    %v987 = vadd.f32 %v986, %v924
    %v988 = vadd.f32 %v987, %v925
    %v989 = vadd.f32 %v988, %v926
    %v990 = vadd.f32 %v989, %v927
    %v991 = vadd.f32 %v990, %v928
    %v992 = vadd.f32 %v991, %v929
    %v993 = vadd.f32 %v992, %v930
    %v994 = vadd.f32 %v993, %v931
    %v995 = vadd.f32 %v994, %v932
    %v996 = vadd.f32 %v995, %v933
    %v997 = vadd.f32 %v996, %v934
    %v998 = vadd.f32 %v997, %v935
    %v999 = vadd.f32 %v998, %v936
    %v1000 = vadd.f32 %v999, %v937
    %v1001 = vadd.f32 %v1000, %v938
    %v1002 = vadd.f32 %v1001, %v939
    %v1003 = vadd.f32 %v1002, %v940
    %1004 = vadd.xlane.f32.xlu0 %v1003
    %v1005 = vpop.xlane.xlu0 %1004
    %v1006 = vrot.slane %v1005, 4
    %v1007 = vadd.f32 %v1005, %v1006
    %v1008 = vrot.slane %v1007, 2
    %v1009 = vadd.f32 %v1007, %v1008
    %v1010 = vrot.slane %v1009, 1
    %v1011 = vadd.f32 %v1009, %v1010
    %s1012 = vtos %v1011
    %v1013 = vmul.f32 %v696, %v696
    %v1015 = vperm.slane %v1013, 0
    %v1016 = vperm.slane %v1013, 2
    %vm1019 = vcmask 1040384
    %v1020 = vsel %vm1019, %v1015, 0.0
    %v1021 = vsel %vm1019, %v1016, 0.0
    %v1022 = vadd.f32 %v1020, %v1021
    %1023 = vadd.xlane.f32.xlu0 %v1022
    %v1024 = vpop.xlane.xlu0 %1023
    %v1025 = vrot.slane %v1024, 4
    %v1026 = vadd.f32 %v1024, %v1025
    %v1027 = vrot.slane %v1026, 2
    %v1028 = vadd.f32 %v1026, %v1027
    %v1029 = vrot.slane %v1028, 1
    %v1030 = vadd.f32 %v1028, %v1029
    %s1031 = vtos %v1030
    %p1032 = scmp.eq.s32.totalorder 0, 0
    %s1033 = scalar_select %p697, %s1031, 0.0
    %s1034 = sadd.f32 %s1012, %s1033
    %s1035 = scalar_select %p1032, %s1034, 0.0
    %v1036 = vstv %s1035
    %vm1037 = vcmask 0
    %1038 = vst.msk [vmem:[#allocation11] sm:$0x1] %vm1037, %v1036
    // Predicated region
    $region38: #{tpu_custom_call.1} parent=1 // pred_check
      _
    $region39: #{tpu_custom_call.1} parent=1 // pred_check_branch
      %1040 = sbr.rel (0) target = $region41
    $region40: #{tpu_custom_call.1} parent=1 // pred_region
      %1042 = vsyncadd [#allocation5], 0
      %s1043 = sshll.u32 [#allocation10], 4
      %s1044 = int_to_ptr.vmem [resolvable:$true] %s1043
      %s1045 = sshll.u32 %s4, 4
      %s1046 = int_to_ptr.hbm [resolvable:$true] %s1045
      %1051 = dma.vmem_to_hbm [thread:$0]  %s1044, 768, %s1046, [#allocation5], 256, 256, 16
    $region41: #{tpu_custom_call.1} parent=1 // pred_fallthru
      _
    // Predicated region
    $region42: #{tpu_custom_call.1} parent=1 // pred_check
      _
    $region43: #{tpu_custom_call.1} parent=1 // pred_check_branch
      %1053 = sbr.rel (0) target = $region45
    $region44: #{tpu_custom_call.1} parent=1 // pred_region
      %s1054 = sadd.s32 0, 0
      %s1055 = sadd.s32 %s1054, 0
      %1057 = vsyncadd [#allocation12], 0
      %s1058 = scalar_lea.hbm %s5, %s1055
      %s1060 = sshll.u32 [#allocation11], 4
      %s1061 = int_to_ptr.vmem [resolvable:$true] %s1060
      %s1062 = sshll.u32 %s1058, 4
      %s1063 = int_to_ptr.hbm [resolvable:$true] %s1062
      %1065 = dma.vmem_to_hbm [thread:$0]  %s1061, 16, %s1063, [#allocation12]
    $region45: #{tpu_custom_call.1} parent=1 // pred_fallthru
      _
    // Predicated region
    $region46: #{tpu_custom_call.1} parent=1 // pred_check
      _
    $region47: #{tpu_custom_call.1} parent=1 // pred_check_branch
      %1067 = sbr.rel (0) target = $region49
    $region48: #{tpu_custom_call.1} parent=1 // pred_region
      %1069 = dma.done [#allocation5], 768
    $region49: #{tpu_custom_call.1} parent=1 // pred_fallthru
      _
    // Predicated region
    $region50: #{tpu_custom_call.1} parent=1 // pred_check
      _
    $region51: #{tpu_custom_call.1} parent=1 // pred_check_branch
      %1071 = sbr.rel (0) target = $region53
    $region52: #{tpu_custom_call.1} parent=1 // pred_region
      %1073 = dma.done [#allocation12], 16
    $region53: #{tpu_custom_call.1} parent=1 // pred_fallthru
      _
    %1074 = vsyncpa [#allocation4], 1
    %1075 = vsyncpa [#allocation9], 1
    %1076 = vsyncpa [#allocation5], 1
    %1077 = vsyncpa [#allocation12], 1
    %1078 = vsyncpa [#allocation6], 1

</llo_original>
